<compile_context>
chip_gen: v6e
topology: v6e:2x2x1
jax: 0.10.0
libtpu: 0.0.40
codegen_flags: <defaults>
</compile_context>

<pallas_src>
import numpy as np
import jax
import jax.numpy as jnp
from jax.experimental import pallas as pl
from jax.experimental.pallas import tpu as pltpu


def order2_kernel(xc_ref, w_ref, wxr_ref, o_ref):
    # xc_ref : (Bt, F, 1)  x block with trailing singleton (lane-broadcast source)
    # w_ref  : (F, K)      shared parameter tile, resident across grid steps
    # wxr_ref: (Bt, K, F)  (x[:, :, None] * W).reshape(B, K, F) block (PyTorch view quirk)
    # o_ref  : (Bt, F, F)
    wx = xc_ref[...] * w_ref[...]                      # (Bt, F, K) elementwise on VPU
    o_ref[...] = jnp.einsum(                           # Bt batched (F,K)@(K,F) on MXU
        "bfk,bkg->bfg", wx, wxr_ref[...],
        preferred_element_type=jnp.float32)


def _pick_block_b(B: int) -> int:
    """Batch block size: prefer >=2 grid steps (v7x megacore), Bt | B, modest VMEM."""
    if B <= 1:
        return max(B, 1)
    # Cap keeps double-buffered (Bt*F*K + Bt*K*F + Bt*F*F) f32 tiles far below the
    # 32 MiB scoped VMEM default on all generations (incl. v7x's 64 MiB physical).
    bt = min(B // 2 if B % 2 == 0 else B, 128)
    while B % bt != 0:
        bt -= 1
    return bt


def order2_forward(x, W, *, block_b=None):
    B, F = x.shape
    F2, K = W.shape
    assert F == F2
    Bt = _pick_block_b(B) if block_b is None else block_b
    assert B % Bt == 0

    x_col = x[:, :, None]                              # (B, F, 1)   bitcast view
    # One fused XLA op produces the reshaped operand; the .reshape itself is a bitcast.
    wxr = (x_col * W[None, :, :]).reshape(B, K, F)     # (B, K, F)

    out = pl.pallas_call(
        order2_kernel,
        out_shape=jax.ShapeDtypeStruct((B, F, F), jnp.float32),
        grid_spec=pltpu.PrefetchScalarGridSpec(
            num_scalar_prefetch=0,
            grid=(B // Bt,),
            in_specs=[
                pl.BlockSpec((Bt, F, 1), lambda b: (b, 0, 0)),
                pl.BlockSpec((F, K), lambda b: (0, 0)),        # W stays resident
                pl.BlockSpec((Bt, K, F), lambda b: (b, 0, 0)),
            ],
            out_specs=pl.BlockSpec((Bt, F, F), lambda b: (b, 0, 0)),
        ),
        compiler_params=pltpu.CompilerParams(
            dimension_semantics=("parallel",)),
    )(x_col, W, wxr)

    # torch.tril(...).reshape(-1) boolean-mask gather, applied to the flat bitcast view.
    mask = np.tril(np.ones((F, F), dtype=bool)).reshape(-1)
    idx = np.nonzero(mask)[0]
    return jnp.take(out.reshape(B, F * F), idx, axis=1)


if __name__ == "__main__":
    B, in_dim, emb_dim = 4, 16, 8

    key = jax.random.PRNGKey(0)
    kx, kw = jax.random.split(key)
    x = jax.random.normal(kx, (B, in_dim), dtype=jnp.float32)

    # deterministic xavier_uniform_-style init for W (in_dim, emb_dim)
    bound = float(np.sqrt(6.0 / (in_dim + emb_dim)))
    W = jax.random.uniform(kw, (in_dim, emb_dim), dtype=jnp.float32,
                           minval=-bound, maxval=bound)

    out = jax.block_until_ready(order2_forward(x, W))

    # pure-JAX reference (same semantics, incl. the reshape quirk)
    wx_ref = x[:, :, None] * W[None]
    full_ref = jnp.einsum("bfk,bkg->bfg", wx_ref, wx_ref.reshape(B, emb_dim, in_dim))
    mask = np.tril(np.ones((in_dim, in_dim), dtype=bool)).reshape(-1)
    ref = full_ref.reshape(B, -1)[:, np.nonzero(mask)[0]]

    np.testing.assert_allclose(np.asarray(out), np.asarray(ref), rtol=1e-5, atol=1e-5)
    assert out.shape == (B, in_dim * (in_dim + 1) // 2)
    print("KERNEL_OK")
</pallas_src>

<mosaic_0001>
module attributes {stable_mosaic.version = 11 : i64} {
  func.func @order2_kernel(%arg0: i32, %arg1: memref<2x16x1xf32, #tpu.memory_space<vmem>>, %arg2: memref<16x8xf32, #tpu.memory_space<vmem>>, %arg3: memref<2x8x16xf32, #tpu.memory_space<vmem>>, %arg4: memref<2x16x16xf32, #tpu.memory_space<vmem>>) attributes {dimension_semantics = [#tpu.dimension_semantics<parallel>], iteration_bounds = array<i64: 2>, scalar_prefetch = 0 : i64, scratch_operands = 0 : i64, tpu.core_type = #tpu.core_type<tc>, window_params = [{transform_indices = @transform_0, window_bounds = array<i64: 2, 16, 1>}, {pipeline_mode = #tpu.pipeline_mode<synchronous>, transform_indices = @transform_1, window_bounds = array<i64: 16, 8>}, {transform_indices = @transform_2, window_bounds = array<i64: 2, 8, 16>}, {transform_indices = @transform_3, window_bounds = array<i64: 2, 16, 16>}]} {
    %c0 = arith.constant 0 : index
    %c0_0 = arith.constant 0 : index
    %c0_1 = arith.constant 0 : index
    %0 = vector.load %arg1[%c0, %c0_0, %c0_1] : memref<2x16x1xf32, #tpu.memory_space<vmem>>, vector<2x16x1xf32>
    %c0_2 = arith.constant 0 : index
    %c0_3 = arith.constant 0 : index
    %1 = vector.load %arg2[%c0_2, %c0_3] : memref<16x8xf32, #tpu.memory_space<vmem>>, vector<16x8xf32>
    %2 = vector.shape_cast %1 : vector<16x8xf32> to vector<1x16x8xf32>
    %3 = vector.broadcast %0 : vector<2x16x1xf32> to vector<2x16x8xf32>
    %4 = vector.broadcast %2 : vector<1x16x8xf32> to vector<2x16x8xf32>
    %5 = arith.mulf %3, %4 : vector<2x16x8xf32>
    %c0_4 = arith.constant 0 : index
    %c0_5 = arith.constant 0 : index
    %c0_6 = arith.constant 0 : index
    %6 = vector.load %arg3[%c0_4, %c0_5, %c0_6] : memref<2x8x16xf32, #tpu.memory_space<vmem>>, vector<2x8x16xf32>
    "tpu.trace_start"() <{level = 10 : i32, message = "bfk,bkg->bfg"}> : () -> ()
    %cst = arith.constant dense<0.000000e+00> : vector<2x16x16xf32>
    %7 = tpu.matmul %5, %6, %cst {dimension_numbers = #tpu.dot_dimension_numbers<[2], [1], [1], [2], [0, 0, 0, 1, 1, 2], [0], [0]>} : vector<2x16x8xf32>, vector<2x8x16xf32>, vector<2x16x16xf32> -> vector<2x16x16xf32>
    "tpu.trace_stop"() : () -> ()
    %c0_7 = arith.constant 0 : index
    %c0_8 = arith.constant 0 : index
    %c0_9 = arith.constant 0 : index
    %8 = vector.load %arg4[%c0_7, %c0_8, %c0_9] : memref<2x16x16xf32, #tpu.memory_space<vmem>>, vector<2x16x16xf32>
    tpu.vector_store %arg4[%c0_7, %c0_8, %c0_9], %7 {strides = array<i32>} : memref<2x16x16xf32, #tpu.memory_space<vmem>>, vector<2x16x16xf32>,
    return
  }
  func.func @transform_0(%arg0: i32) -> (i32, i32, i32) {
    %c0_i32 = arith.constant 0 : i32
    %c0_i32_0 = arith.constant 0 : i32
    %c0_i32_1 = arith.constant 0 : i32
    return %arg0, %c0_i32, %c0_i32_0 : i32, i32, i32
  }
  func.func @transform_1(%arg0: i32) -> (i32, i32) {
    %c0_i32 = arith.constant 0 : i32
    %c0_i32_0 = arith.constant 0 : i32
    %c0_i32_1 = arith.constant 0 : i32
    return %c0_i32, %c0_i32_0 : i32, i32
  }
  func.func @transform_2(%arg0: i32) -> (i32, i32, i32) {
    %c0_i32 = arith.constant 0 : i32
    %c0_i32_0 = arith.constant 0 : i32
    %c0_i32_1 = arith.constant 0 : i32
    return %arg0, %c0_i32, %c0_i32_0 : i32, i32, i32
  }
  func.func @transform_3(%arg0: i32) -> (i32, i32, i32) {
    %c0_i32 = arith.constant 0 : i32
    %c0_i32_0 = arith.constant 0 : i32
    %c0_i32_1 = arith.constant 0 : i32
    return %arg0, %c0_i32, %c0_i32_0 : i32, i32, i32
  }
}

</mosaic_0001>

<llo_original>
// kernel: tpu_custom_call.1
$region0: #{tpu_custom_call.1}
  #allocation0 [shape = 'u32[]', space=smem, size = 0x4, offset = 0x4, fixed_abs, tag = 'smem constant byte address 0x4 - core index']
  #allocation1 [shape = 'u32[144,128]{1,0:T(1,128)}', space=vmem, size = 0x12000, scoped, tag = 'internal scratch']
  %s0 = inlined_call_operand.vmem [shape: f32[4,16,1], index: 0, kind: input, shape index: {}]
  %s1 = inlined_call_operand.vmem [shape: f32[16,8], index: 1, kind: input, shape index: {}]
  %s2 = inlined_call_operand.vmem [shape: f32[4,8,16], index: 2, kind: input, shape index: {}]
  %s3 = inlined_call_operand.hbm [shape: f32[4,16,16], index: 3, kind: output, shape index: {}]
  %s4 = sld [smem:[#allocation0]]
  $region45: #{tpu_custom_call.1} parent=0
    _
  %s6 = ssub.s32 1, %s4
  %s7 = scalar_select 0, %s6, %s4
  $region1: #{tpu_custom_call.1} parent=0
    #allocation2 [shape = 'u8[32768]{0}', space=vmem, size = 0x8000, scoped, tag = 'output window, operand 0']
    #allocation3 [shape = 's32[2]{0}', space=sflag, size = 0x8, scoped, tag = 'scoped memory for tpu_custom_call.1']
    %8 = vsyncpa [#allocation3], 0
    %s9 = scalar_lea.sflag [#allocation3], 1
    %10 = vsyncpa %s9, 0
    loop: start=0, step=1, limit=4
    $region2: #{tpu_custom_call.1} parent=1 // loop_pre_header
      _
    $region3: #{tpu_custom_call.1} parent=1 // loop_header
      %s12 = sphi 0, %s16
      %p13 = scmp.ge.s32.totalorder %s12, 4
      %s22 = sphi 0, %s24
      %s25 = sphi 0, %s22
      %s26 = sphi 0, %s25
      %s42 = sphi 0, %s26
      %s46 = sphi 0, %s46
      %s48 = sphi 0, %s46
      %s49 = sphi 0, %s48
      %s63 = sphi 0, %s49
      %s69 = sphi 0, %s71
      %s72 = sphi 0, %s69
      %s73 = sphi 0, %s72
      %s89 = sphi 0, %s73
      %s95 = sphi 0, %s97
      %s98 = sphi 0, %s95
      %s99 = sphi 0, %s98
      %s115 = sphi 0, %s99
    $region4: #{tpu_custom_call.1} parent=1 // loop_header_branch
      %15 = sbr.rel (%p13) target = $region8
    $region5: #{tpu_custom_call.1} parent=1 // loop_body
      %s17 = ssub.s32 %s12, 1
      %s18 = ssub.s32 %s12, 2
      %s19 = sadd.s32 %s12, 1
      %s20 = ssub.s32 %s12, %s19
      %p21 = scmp.eq.s32.totalorder %s20, 0
      %s23 = sadd.s32 %s22, 1
      %s24 = scalar_select %p21, %s22, %s23
      %p27 = pneg %p21
      %p28 = scmp.eq.s32.totalorder %s12, 1
      %p29 = por %p27, %p28
      %p30 = scmp.ne.s32.totalorder %s22, %s25
      %p31 = scmp.eq.s32.totalorder %s12, 0
      %p32 = por %p30, %p31
      %p33 = scmp.ne.s32.totalorder %s22, %s25
      %p34 = scmp.eq.s32.totalorder %s17, 1
      %p35 = por %p33, %p34
      %p36 = scmp.ne.s32.totalorder %s25, %s26
      %p37 = scmp.eq.s32.totalorder %s17, 0
      %p38 = por %p36, %p37
      %p39 = scmp.ne.s32.totalorder %s25, %s26
      %p40 = scmp.eq.s32.totalorder %s18, 1
      %p41 = por %p39, %p40
      %p43 = scmp.ne.s32.totalorder %s26, %s42
      %p44 = scmp.eq.s32.totalorder %s18, 0
      %p45 = por %p43, %p44
      %s47 = sadd.s32 %s46, 1
      %p50 = scmp.eq.s32.totalorder %s12, 1
      %p51 = scmp.ne.s32.totalorder %s46, %s48
      %p52 = scmp.eq.s32.totalorder %s12, 0
      %p53 = por %p51, %p52
      %p54 = scmp.ne.s32.totalorder %s46, %s48
      %p55 = scmp.eq.s32.totalorder %s17, 1
      %p56 = por %p54, %p55
      %p57 = scmp.ne.s32.totalorder %s48, %s49
      %p58 = scmp.eq.s32.totalorder %s17, 0
      %p59 = por %p57, %p58
      %p60 = scmp.ne.s32.totalorder %s48, %s49
      %p61 = scmp.eq.s32.totalorder %s18, 1
      %p62 = por %p60, %p61
      %p64 = scmp.ne.s32.totalorder %s49, %s63
      %p65 = scmp.eq.s32.totalorder %s18, 0
      %p66 = por %p64, %p65
      %s67 = ssub.s32 %s12, %s19
      %p68 = scmp.eq.s32.totalorder %s67, 0
      %s70 = sadd.s32 %s69, 1
      %s71 = scalar_select %p68, %s69, %s70
      %p74 = pneg %p68
      %p75 = scmp.eq.s32.totalorder %s12, 1
      %p76 = por %p74, %p75
      %p77 = scmp.ne.s32.totalorder %s69, %s72
      %p78 = scmp.eq.s32.totalorder %s12, 0
      %p79 = por %p77, %p78
      %p80 = scmp.ne.s32.totalorder %s69, %s72
      %p81 = scmp.eq.s32.totalorder %s17, 1
      %p82 = por %p80, %p81
      %p83 = scmp.ne.s32.totalorder %s72, %s73
      %p84 = scmp.eq.s32.totalorder %s17, 0
      %p85 = por %p83, %p84
      %p86 = scmp.ne.s32.totalorder %s72, %s73
      %p87 = scmp.eq.s32.totalorder %s18, 1
      %p88 = por %p86, %p87
      %p90 = scmp.ne.s32.totalorder %s73, %s89
      %p91 = scmp.eq.s32.totalorder %s18, 0
      %p92 = por %p90, %p91
      %s93 = ssub.s32 %s12, %s19
      %p94 = scmp.eq.s32.totalorder %s93, 0
      %s96 = sadd.s32 %s95, 1
      %s97 = scalar_select %p94, %s95, %s96
      %p100 = pneg %p94
      %p101 = scmp.eq.s32.totalorder %s12, 1
      %p102 = por %p100, %p101
      %p103 = scmp.ne.s32.totalorder %s95, %s98
      %p104 = scmp.eq.s32.totalorder %s12, 0
      %p105 = por %p103, %p104
      %p106 = scmp.ne.s32.totalorder %s95, %s98
      %p107 = scmp.eq.s32.totalorder %s17, 1
      %p108 = por %p106, %p107
      %p109 = scmp.ne.s32.totalorder %s98, %s99
      %p110 = scmp.eq.s32.totalorder %s17, 0
      %p111 = por %p109, %p110
      %p112 = scmp.ne.s32.totalorder %s98, %s99
      %p113 = scmp.eq.s32.totalorder %s18, 1
      %p114 = por %p112, %p113
      %p116 = scmp.ne.s32.totalorder %s99, %s115
      %p117 = scmp.eq.s32.totalorder %s18, 0
      %p118 = por %p116, %p117
      %p119 = scmp.le.s32.totalorder 1, %s12
      %p120 = scmp.lt.s32.totalorder %s12, 3
      %p121 = pnand %p119, %p120
      %p122 = pneg %p121
      // Predicated region
      $region9: #{tpu_custom_call.1} parent=5 // pred_check
        _
      $region10: #{tpu_custom_call.1} parent=5 // pred_check_branch
        %124 = sbr.rel (%p121) target = $region12
      $region11: #{tpu_custom_call.1} parent=5 // pred_region
        %s125 = ssub.s32 %s12, 1
        // Predicated region
        $region13: #{tpu_custom_call.1} parent=11 // pred_check
          %p126 = pneg %p59
        $region14: #{tpu_custom_call.1} parent=11 // pred_check_branch
          %128 = sbr.rel (%p126) target = $region16
        $region15: #{tpu_custom_call.1} parent=11 // pred_region
          _
        $region16: #{tpu_custom_call.1} parent=11 // pred_fallthru
          _
      $region12: #{tpu_custom_call.1} parent=5 // pred_fallthru
        _
      %p129 = scmp.lt.s32.totalorder %s12, 2
      // Predicated region
      $region17: #{tpu_custom_call.1} parent=5 // pred_check
        %p130 = pneg %p129
      $region18: #{tpu_custom_call.1} parent=5 // pred_check_branch
        %132 = sbr.rel (%p130) target = $region20
      $region19: #{tpu_custom_call.1} parent=5 // pred_region
        // Predicated region
        $region21: #{tpu_custom_call.1} parent=19 // pred_check
          %p133 = pneg %p32
        $region22: #{tpu_custom_call.1} parent=19 // pred_check_branch
          %135 = sbr.rel (%p133) target = $region24
        $region23: #{tpu_custom_call.1} parent=19 // pred_region
          %s136 = smul.u32 2, %s12
          %p137 = scmp.lt.s32.totalorder %s136, 3
          %s138 = scalar_select %p137, %s136, 3
          %s139 = smul.addr %s138, 2
          %s140 = smul.addr %s139, 8
          %s141 = scalar_lea.vmem %s0, %s140
          %s142 = smul.u32 2, %s12
        $region24: #{tpu_custom_call.1} parent=19 // pred_fallthru
          _
        // Predicated region
        $region25: #{tpu_custom_call.1} parent=19 // pred_check
          %p143 = pneg %p79
        $region26: #{tpu_custom_call.1} parent=19 // pred_check_branch
          %145 = sbr.rel (%p143) target = $region28
        $region27: #{tpu_custom_call.1} parent=19 // pred_region
          %s146 = smul.u32 2, %s12
          %p147 = scmp.lt.s32.totalorder %s146, 3
          %s148 = scalar_select %p147, %s146, 3
          %s149 = smul.addr %s148, 8
          %s150 = scalar_lea.vmem %s2, %s149
          %s151 = smul.u32 2, %s12
        $region28: #{tpu_custom_call.1} parent=19 // pred_fallthru
          _
      $region20: #{tpu_custom_call.1} parent=5 // pred_fallthru
        _
      %p152 = scmp.le.s32.totalorder 1, %s12
      %p153 = scmp.lt.s32.totalorder %s12, 3
      %p154 = pnand %p152, %p153
      %p155 = pneg %p154
      // Predicated region
      $region29: #{tpu_custom_call.1} parent=5 // pred_check
        _
      $region30: #{tpu_custom_call.1} parent=5 // pred_check_branch
        %157 = sbr.rel (%p154) target = $region32
      $region31: #{tpu_custom_call.1} parent=5 // pred_region
        %s158 = ssub.s32 %s12, 1
        %s159 = smul.u32 2, %s17
        %p160 = scmp.lt.s32.totalorder %s159, 3
        %s161 = scalar_select %p160, %s159, 3
        %s162 = smul.addr %s161, 2
        %s163 = smul.addr %s162, 8
        %s164 = scalar_lea.vmem %s0, %s163
        %p165 = pneg %p38
        %p166 = pneg %p35
        %p167 = pneg %p59
        %p168 = pneg %p56
        %s169 = smul.u32 2, %s17
        %p170 = scmp.lt.s32.totalorder %s169, 3
        %s171 = scalar_select %p170, %s169, 3
        %s172 = smul.addr %s171, 8
        %s173 = scalar_lea.vmem %s2, %s172
        %p174 = pneg %p85
        %p175 = pneg %p82
        %p176 = pneg %p111
        %p177 = pneg %p108
        %s178 = sand.u32 %s98, 1
        %s179 = scalar_lea.sflag [#allocation3], %s178
        %s180 = sand.u32 %s98, 1
        %s181 = smul.addr %s180, 32
        %s182 = scalar_lea.vmem [#allocation2], %s181
        %s183 = smul.u32 2, %s17
        %p184 = scmp.lt.s32.totalorder %s183, 3
        %s185 = scalar_select %p184, %s183, 3
        %s186 = smul.addr %s185, 2
        %s187 = smul.addr %s186, 8
        %s188 = scalar_lea.vmem %s0, %s187
        %s189 = smul.u32 2, %s17
        %s190 = smul.u32 2, %s17
        %p191 = scmp.lt.s32.totalorder %s190, 3
        %s192 = scalar_select %p191, %s190, 3
        %s193 = smul.addr %s192, 8
        %s194 = scalar_lea.vmem %s2, %s193
        %s195 = smul.u32 2, %s17
        %s196 = smul.u32 2, %s17
        %v197 = vld [vmem:[%s188] sm:$0xff]
        %v198 = vld [vmem:[%s188 + $0x8] sm:$0xff]
        %v199 = vld [vmem:[%s188 + $0x10] sm:$0xff]
        %v200 = vld [vmem:[%s188 + $0x18] sm:$0xff]
        %v201 = vld [vmem:[%s1] sm:$0xff]
        %v202 = vld [vmem:[%s1 + $0x8] sm:$0xff]
        %204 = vset.pattern.permute.xlu0 0
        %205 = vperm.xlu0 %204, %v197
        %v206 = vpop.permute.xlu0 %205
        %209 = vset.pattern.permute.xlu0 0
        %210 = vperm.xlu0 %209, %v198
        %v211 = vpop.permute.xlu0 %210
        %214 = vset.pattern.permute.xlu0 0
        %215 = vperm.xlu0 %214, %v199
        %v216 = vpop.permute.xlu0 %215
        %219 = vset.pattern.permute.xlu0 0
        %220 = vperm.xlu0 %219, %v200
        %v221 = vpop.permute.xlu0 %220
        %v223 = vmul.f32 %v206, %v201
        %v224 = vmul.f32 %v211, %v202
        %v225 = vmul.f32 %v216, %v201
        %v226 = vmul.f32 %v221, %v202
        %v227 = vld [vmem:[%s194] sm:$0xff]
        %v228 = vld [vmem:[%s194 + $0x8] sm:$0xff]
        %vm229 = vcmask 64512
        %v231 = vsel %vm229, %v223, 0
        %v234 = vsel %vm229, %v224, 0
        %236 = vmatprep.subr.mxu0 0.0
        %237 = vmatpush1.msra.mxu0 0.0
        %238 = vmatprep.subr.mxu0 0.0
        %239 = vmatpush1.msra.mxu0 0.0
        %240 = vmatprep.subr.mxu0 0.0
        %241 = vmatpush1.msra.mxu0 0.0
        %242 = vmatprep.subr.mxu0 0.0
        %243 = vmatpush1.msra.mxu0 0.0
        %244 = vmatprep.subr.mxu0 0.0
        %245 = vmatpush1.msra.mxu0 0.0
        %246 = vmatprep.subr.mxu0 0.0
        %247 = vmatpush1.msra.mxu0 0.0
        %248 = vmatprep.subr.mxu0 0.0
        %249 = vmatpush1.msra.mxu0 0.0
        %250 = vmatprep.subr.mxu0 0.0
        %251 = vmatpush1.msra.mxu0 0.0
        %252 = vmatprep.subr.mxu0 0.0
        %253 = vmatpush1.msra.mxu0 0.0
        %254 = vmatprep.subr.mxu0 0.0
        %255 = vmatpush1.msra.mxu0 0.0
        %256 = vmatprep.subr.mxu0 0.0
        %257 = vmatpush1.msra.mxu0 0.0
        %258 = vmatprep.subr.mxu0 0.0
        %259 = vmatpush1.msra.mxu0 0.0
        %260 = vmatprep.subr.mxu0 0.0
        %261 = vmatpush1.msra.mxu0 0.0
        %262 = vmatprep.subr.mxu0 0.0
        %263 = vmatpush1.msra.mxu0 0.0
        %264 = vmatprep.subr.mxu0 0.0
        %265 = vmatpush1.msra.mxu0 0.0
        %266 = vmatprep.subr.mxu0 0.0
        %267 = vmatpush1.msra.mxu0 %v227
        %268 = vmatprep.subr.mxu0 0.0
        %269 = vmatpush2.msra.mxu0 0.0
        %270 = vmatprep.subr.mxu0 0.0
        %271 = vmatpush2.msra.mxu0 0.0
        %272 = vmatprep.subr.mxu0 0.0
        %273 = vmatpush2.msra.mxu0 0.0
        %274 = vmatprep.subr.mxu0 0.0
        %275 = vmatpush2.msra.mxu0 0.0
        %276 = vmatprep.subr.mxu0 0.0
        %277 = vmatpush2.msra.mxu0 0.0
        %278 = vmatprep.subr.mxu0 0.0
        %279 = vmatpush2.msra.mxu0 0.0
        %280 = vmatprep.subr.mxu0 0.0
        %281 = vmatpush2.msra.mxu0 0.0
        %282 = vmatprep.subr.mxu0 0.0
        %283 = vmatpush2.msra.mxu0 0.0
        %284 = vmatprep.subr.mxu0 0.0
        %285 = vmatpush2.msra.mxu0 0.0
        %286 = vmatprep.subr.mxu0 0.0
        %287 = vmatpush2.msra.mxu0 0.0
        %288 = vmatprep.subr.mxu0 0.0
        %289 = vmatpush2.msra.mxu0 0.0
        %290 = vmatprep.subr.mxu0 0.0
        %291 = vmatpush2.msra.mxu0 0.0
        %292 = vmatprep.subr.mxu0 0.0
        %293 = vmatpush2.msra.mxu0 0.0
        %294 = vmatprep.subr.mxu0 0.0
        %295 = vmatpush2.msra.mxu0 0.0
        %296 = vmatprep.subr.mxu0 0.0
        %297 = vmatpush2.msra.mxu0 0.0
        %298 = vmatprep.subr.mxu0 0.0
        %299 = vmatpush2.msra.mxu0 0.0
        %300 = vmatprep.mubr.f32.mxu0 0.0
        %301 = vmatmul.mubr.f32.gmra.mxu0 %v231
        %v302 = vpop.f32.mrf.mxu0
        %v303 = vadd.f32 0.0, %v302
        %v304 = vpop.f32.mrf.mxu0
        %305 = vmatprep.mubr.f32.mxu0 0.0
        %306 = vmatmul.mubr.f32.gmra.mxu0 %v234
        %v307 = vpop.f32.mrf.mxu0
        %v308 = vadd.f32 0.0, %v307
        %v309 = vpop.f32.mrf.mxu0
        %310 = vdwg.mxu0
        %v312 = vsel %vm229, %v225, 0
        %v315 = vsel %vm229, %v226, 0
        %317 = vmatprep.subr.mxu0 0.0
        %318 = vmatpush1.msra.mxu0 0.0
        %319 = vmatprep.subr.mxu0 0.0
        %320 = vmatpush1.msra.mxu0 0.0
        %321 = vmatprep.subr.mxu0 0.0
        %322 = vmatpush1.msra.mxu0 0.0
        %323 = vmatprep.subr.mxu0 0.0
        %324 = vmatpush1.msra.mxu0 0.0
        %325 = vmatprep.subr.mxu0 0.0
        %326 = vmatpush1.msra.mxu0 0.0
        %327 = vmatprep.subr.mxu0 0.0
        %328 = vmatpush1.msra.mxu0 0.0
        %329 = vmatprep.subr.mxu0 0.0
        %330 = vmatpush1.msra.mxu0 0.0
        %331 = vmatprep.subr.mxu0 0.0
        %332 = vmatpush1.msra.mxu0 0.0
        %333 = vmatprep.subr.mxu0 0.0
        %334 = vmatpush1.msra.mxu0 0.0
        %335 = vmatprep.subr.mxu0 0.0
        %336 = vmatpush1.msra.mxu0 0.0
        %337 = vmatprep.subr.mxu0 0.0
        %338 = vmatpush1.msra.mxu0 0.0
        %339 = vmatprep.subr.mxu0 0.0
        %340 = vmatpush1.msra.mxu0 0.0
        %341 = vmatprep.subr.mxu0 0.0
        %342 = vmatpush1.msra.mxu0 0.0
        %343 = vmatprep.subr.mxu0 0.0
        %344 = vmatpush1.msra.mxu0 0.0
        %345 = vmatprep.subr.mxu0 0.0
        %346 = vmatpush1.msra.mxu0 0.0
        %347 = vmatprep.subr.mxu0 0.0
        %348 = vmatpush1.msra.mxu0 %v228
        %349 = vmatprep.subr.mxu0 0.0
        %350 = vmatpush2.msra.mxu0 0.0
        %351 = vmatprep.subr.mxu0 0.0
        %352 = vmatpush2.msra.mxu0 0.0
        %353 = vmatprep.subr.mxu0 0.0
        %354 = vmatpush2.msra.mxu0 0.0
        %355 = vmatprep.subr.mxu0 0.0
        %356 = vmatpush2.msra.mxu0 0.0
        %357 = vmatprep.subr.mxu0 0.0
        %358 = vmatpush2.msra.mxu0 0.0
        %359 = vmatprep.subr.mxu0 0.0
        %360 = vmatpush2.msra.mxu0 0.0
        %361 = vmatprep.subr.mxu0 0.0
        %362 = vmatpush2.msra.mxu0 0.0
        %363 = vmatprep.subr.mxu0 0.0
        %364 = vmatpush2.msra.mxu0 0.0
        %365 = vmatprep.subr.mxu0 0.0
        %366 = vmatpush2.msra.mxu0 0.0
        %367 = vmatprep.subr.mxu0 0.0
        %368 = vmatpush2.msra.mxu0 0.0
        %369 = vmatprep.subr.mxu0 0.0
        %370 = vmatpush2.msra.mxu0 0.0
        %371 = vmatprep.subr.mxu0 0.0
        %372 = vmatpush2.msra.mxu0 0.0
        %373 = vmatprep.subr.mxu0 0.0
        %374 = vmatpush2.msra.mxu0 0.0
        %375 = vmatprep.subr.mxu0 0.0
        %376 = vmatpush2.msra.mxu0 0.0
        %377 = vmatprep.subr.mxu0 0.0
        %378 = vmatpush2.msra.mxu0 0.0
        %379 = vmatprep.subr.mxu0 0.0
        %380 = vmatpush2.msra.mxu0 0.0
        %381 = vmatprep.mubr.f32.mxu0 0.0
        %382 = vmatmul.mubr.f32.gmra.mxu0 %v312
        %v383 = vpop.f32.mrf.mxu0
        %v384 = vadd.f32 0.0, %v383
        %v385 = vpop.f32.mrf.mxu0
        %386 = vmatprep.mubr.f32.mxu0 0.0
        %387 = vmatmul.mubr.f32.gmra.mxu0 %v315
        %v388 = vpop.f32.mrf.mxu0
        %v389 = vadd.f32 0.0, %v388
        %v390 = vpop.f32.mrf.mxu0
        %391 = vdwg.mxu0
        %vm392 = vcmask 130048
        %393 = vst.msk [vmem:[%s182] sm:$0xff] %vm392, %v303
        %394 = vst.msk [vmem:[%s182 + $0x8] sm:$0xff] %vm392, %v308
        %395 = vst.msk [vmem:[%s182 + $0x10] sm:$0xff] %vm392, %v384
        %396 = vst.msk [vmem:[%s182 + $0x18] sm:$0xff] %vm392, %v389
        %s397 = sand.u32 %s98, 1
        %s398 = scalar_lea.sflag [#allocation3], %s397
        %s399 = sand.u32 %s98, 1
        %s400 = smul.addr %s399, 32
        %s401 = scalar_lea.vmem [#allocation2], %s400
        // Predicated region
        $region33: #{tpu_custom_call.1} parent=31 // pred_check
          %p402 = pneg %p108
        $region34: #{tpu_custom_call.1} parent=31 // pred_check_branch
          %404 = sbr.rel (%p402) target = $region36
        $region35: #{tpu_custom_call.1} parent=31 // pred_region
          %s405 = smul.u32 2, %s17
          %s407 = ssub.s32 512, 512
          %408 = vsyncadd %s398, %s407
          %s409 = smul.addr %s405, 2
          %s410 = smul.addr %s409, 128
          %s411 = scalar_lea.hbm %s3, %s410
          %s412 = sshll.u32 %s401, 4
          %s413 = int_to_ptr.vmem [resolvable:$true] %s412
          %418 = dma.vmem_to_hbm [thread:$0]  %s413, 512, %s411, %s398, 128, 128, 8
        $region36: #{tpu_custom_call.1} parent=31 // pred_fallthru
          _
      $region32: #{tpu_custom_call.1} parent=5 // pred_fallthru
        _
      %p419 = scmp.le.s32.totalorder 2, %s12
      // Predicated region
      $region37: #{tpu_custom_call.1} parent=5 // pred_check
        %p420 = pneg %p419
      $region38: #{tpu_custom_call.1} parent=5 // pred_check_branch
        %422 = sbr.rel (%p420) target = $region40
      $region39: #{tpu_custom_call.1} parent=5 // pred_region
        %s423 = ssub.s32 %s12, 2
        // Predicated region
        $region41: #{tpu_custom_call.1} parent=39 // pred_check
          %p424 = pneg %p114
        $region42: #{tpu_custom_call.1} parent=39 // pred_check_branch
          %426 = sbr.rel (%p424) target = $region44
        $region43: #{tpu_custom_call.1} parent=39 // pred_region
          %s427 = sand.u32 %s99, 1
          %s428 = scalar_lea.sflag [#allocation3], %s427
          %s429 = sand.u32 %s99, 1
          %s430 = smul.addr %s429, 32
          %s431 = scalar_lea.vmem [#allocation2], %s430
          %432 = dma.done %s428, 512
        $region44: #{tpu_custom_call.1} parent=39 // pred_fallthru
          _
      $region40: #{tpu_custom_call.1} parent=5 // pred_fallthru
        _
    $region6: #{tpu_custom_call.1} parent=1 // loop_footer
      %s16 = sadd.s32 1, %s12
    $region7: #{tpu_custom_call.1} parent=1 // loop_footer_branch
      %11 = sbr.rel target = $region3
    $region8: #{tpu_custom_call.1} parent=1 // loop_exit
      _
    %433 = vsyncpa [#allocation3], 1
    %s434 = scalar_lea.sflag [#allocation3], 1
    %435 = vsyncpa %s434, 1

</llo_original>
